<compile_context>
chip_gen: v7x
topology: tpu7x:2x2x1
jax: 0.10.0
libtpu: 0.0.40
codegen_flags: <defaults>
</compile_context>

<pallas_src>
import math
import functools

import jax
import jax.numpy as jnp
from jax.experimental import pallas as pl
from jax.experimental.pallas import tpu as pltpu


# ----------------------------------------------------------------------------
# Fused kernel: single im2col GEMM -> masked max-pool -> bias/ReLU -> Linear
# ----------------------------------------------------------------------------
def _cnnnet_kernel(fsz_list, filter_num,
                   x_ref, wconv_ref, bconv_ref, wlin_ref, blin_ref, out_ref):
    B, S, H = x_ref.shape
    n = len(fsz_list)
    F = filter_num
    nF = n * F
    max_fsz = max(fsz_list)
    R = B * S

    # Flatten batch into the sequence axis once (S is a multiple of 8 -> the
    # merge is layout-cheap).
    x = x_ref[...].reshape(R, H)                               # (R, H) f32

    # im2col via XLU rolls: column block j holds x shifted up by j rows.
    # pltpu.roll with positive shift R - j == jnp.roll(x, -j), i.e.
    # rolled[r] = x[(r + j) % R].  Rows that wrap around or cross a batch
    # boundary only feed positions the pooling mask below excludes.
    cols = [x]
    for j in range(1, max_fsz):
        cols.append(pltpu.roll(x, shift=R - j, axis=0))
    win = jnp.concatenate(cols, axis=-1)                       # (R, max_fsz*H)

    # One fused conv GEMM for all filters: bf16 MXU inputs, f32 accumulation.
    conv = jnp.dot(win.astype(jnp.bfloat16), wconv_ref[...],
                   preferred_element_type=jnp.float32)         # (R, nF) f32

    # Masked single-pass global max-pool over the sequence axis.
    # Position p is valid for filter g iff p < S - fsz_g + 1; this also rules
    # out every contaminated (boundary-straddling / wrapped) row.
    conv3 = conv.reshape(B, S, nF)
    pos = jax.lax.broadcasted_iota(jnp.int32, (B, S, nF), 1)
    col = jax.lax.broadcasted_iota(jnp.int32, (B, S, nF), 2)
    limit = jnp.zeros((B, S, nF), jnp.int32)
    for g, fsz in enumerate(fsz_list):
        in_g = (col >= g * F) & (col < (g + 1) * F)
        limit = jnp.where(in_g, S - fsz + 1, limit)
    masked = jnp.where(pos < limit, conv3, -jnp.inf)
    pooled = jnp.max(masked, axis=1)                           # (B, nF) f32

    # Bias add + ReLU AFTER the pool (both monotone -> commute with max).
    pooled = jnp.maximum(pooled + bconv_ref[...], 0.0)

    # Dropout == identity at inference; final Linear (bf16 MXU, f32 accum).
    logits = jnp.dot(pooled.astype(jnp.bfloat16), wlin_ref[...],
                     preferred_element_type=jnp.float32) + blin_ref[...]
    out_ref[...] = logits.astype(out_ref.dtype)                # (B, H)


def _full_spec(shape):
    nd = len(shape)
    return pl.BlockSpec(shape, lambda i, nd=nd: (0,) * nd)


def cnnnet_forward(x, params, fsz_list, filter_num):
    """x: (B, S, H) float32 -> logits (B, H) float32."""
    B, S, H = x.shape
    n = len(fsz_list)
    F = filter_num
    nF = n * F
    max_fsz = max(fsz_list)

    # Pack all conv weights into one (max_fsz*H, n*F) matrix: filter g lives in
    # rows [0, fsz_g*H) of columns [g*F, (g+1)*F), zeros elsewhere.  Stored in
    # bf16 (halves weight DMA); biases stay f32 (elementwise path is f32).
    wconv = jnp.zeros((max_fsz * H, nF), jnp.float32)
    bconv = jnp.zeros((1, nF), jnp.float32)
    for g, ((w, b), fsz) in enumerate(zip(params["convs"], fsz_list)):
        wconv = wconv.at[:fsz * H, g * F:(g + 1) * F].set(w)
        bconv = bconv.at[:, g * F:(g + 1) * F].set(b)
    wconv = wconv.astype(jnp.bfloat16)
    wlin, blin = params["linear"]
    wlin = wlin.astype(jnp.bfloat16)

    args = (x, wconv, bconv, wlin, blin)

    # VMEM budget derived from the actual buffers (inputs + output + im2col +
    # conv/mask intermediates), with generous headroom — portable across
    # v5e/v6e (128 MiB) and v7x (64 MiB per TC).
    in_bytes = sum(int(a.size) * a.dtype.itemsize for a in args)
    out_bytes = B * H * 4
    interm_bytes = (B * S) * (max_fsz * H) * 4 + 5 * (B * S) * nF * 4
    vmem_limit = int(min(64 << 20, max(4 << 20, 8 * (in_bytes + out_bytes + interm_bytes))))

    # NOTE: grid=(1,) keeps everything VMEM-resident for this tiny problem.
    # If B*S is ever scaled up, add a leading "parallel" grid axis over
    # row-blocks of the flattened sequence (weights pinned to block 0) so
    # v7x's second TensorCore is used and x DMAs get double-buffered.
    return pl.pallas_call(
        functools.partial(_cnnnet_kernel, tuple(fsz_list), F),
        out_shape=jax.ShapeDtypeStruct((B, H), jnp.float32),
        grid=(1,),
        in_specs=[_full_spec(a.shape) for a in args],
        out_specs=_full_spec((B, H)),
        compiler_params=pltpu.CompilerParams(
            dimension_semantics=("arbitrary",),
            vmem_limit_bytes=vmem_limit),
    )(*args)


# ----------------------------------------------------------------------------
# Pure-JAX f32 reference (independent formulation) for correctness checking
# ----------------------------------------------------------------------------
def cnnnet_reference(x, params, fsz_list):
    B, S, H = x.shape
    feats = []
    for (w, b), fsz in zip(params["convs"], fsz_list):
        L = S - fsz + 1
        win = jnp.concatenate([x[:, j:j + L, :] for j in range(fsz)], axis=-1)
        conv = jnp.einsum("blk,kf->blf", win, w) + b        # (B, L, F)
        conv = jnp.maximum(conv, 0.0)
        feats.append(jnp.max(conv, axis=1))                 # (B, F)
    feat = jnp.concatenate(feats, axis=-1)                  # (B, n*F)
    return feat @ params["linear"][0] + params["linear"][1]


# ----------------------------------------------------------------------------
# Deterministic parameter init (shapes follow the module __init__)
# ----------------------------------------------------------------------------
def init_params(key, hidden, filter_num, fsz_list):
    def u(k, shape, bound):
        return jax.random.uniform(k, shape, jnp.float32, -bound, bound)

    k = key
    convs = []
    for fsz in fsz_list:
        fan_in = fsz * hidden                 # Conv2d fan_in = in_ch * kh * kw
        bound = 1.0 / math.sqrt(fan_in)
        k, kw, kb = jax.random.split(k, 3)
        # Pre-transposed conv weight: (fsz*hidden, filter_num), equivalent to
        # torch_weight.reshape(filter_num, fsz*hidden).T (row index = j*H + h).
        w = u(kw, (fsz * hidden, filter_num), bound)
        b = u(kb, (1, filter_num), bound)
        convs.append((w, b))

    lin_in = len(fsz_list) * filter_num
    bound = 1.0 / math.sqrt(lin_in)
    k, kw, kb = jax.random.split(k, 3)
    wlin = u(kw, (lin_in, hidden), bound)     # pre-transposed Linear weight
    blin = u(kb, (1, hidden), bound)
    return {"convs": convs, "linear": (wlin, blin)}


if __name__ == "__main__":
    HIDDEN = 32                 # hidden_size
    FILTER_NUM = 128            # lane-dense conv feature dim (multiple of 128)
    FILTER_SIZES = "2,3,4"
    DROPOUT_RATE = 0.1          # identity at inference
    B, S = 2, 16                # batch, sequence length

    fsz_list = [int(f) for f in FILTER_SIZES.split(",")]

    key = jax.random.PRNGKey(0)
    kx, kp = jax.random.split(key)
    x = jax.random.normal(kx, (B, S, HIDDEN), jnp.float32)
    params = init_params(kp, HIDDEN, FILTER_NUM, fsz_list)

    logits = cnnnet_forward(x, params, fsz_list, FILTER_NUM)
    jax.block_until_ready(logits)

    assert logits.shape == (B, HIDDEN)
    assert bool(jnp.all(jnp.isfinite(logits)))
    # Kernel uses bf16 MXU inputs with f32 accumulation; compare against the
    # f32 reference with a correspondingly loosened tolerance.
    ref = cnnnet_reference(x, params, fsz_list)
    assert bool(jnp.allclose(logits, ref, rtol=5e-2, atol=5e-2))
    print("KERNEL_OK")
</pallas_src>

<mosaic_0001>
module attributes {stable_mosaic.version = 11 : i64} {
  func.func @_cnnnet_kernel(%arg0: i32, %arg1: memref<2x16x32xf32, #tpu.memory_space<vmem>>, %arg2: memref<128x384xbf16, #tpu.memory_space<vmem>>, %arg3: memref<1x384xf32, #tpu.memory_space<vmem>>, %arg4: memref<384x32xbf16, #tpu.memory_space<vmem>>, %arg5: memref<1x32xf32, #tpu.memory_space<vmem>>, %arg6: memref<2x32xf32, #tpu.memory_space<vmem>>) attributes {dimension_semantics = [#tpu.dimension_semantics<arbitrary>], iteration_bounds = array<i64: 1>, scalar_prefetch = 0 : i64, scratch_operands = 0 : i64, tpu.core_type = #tpu.core_type<tc>, window_params = [{pipeline_mode = #tpu.pipeline_mode<synchronous>, transform_indices = @transform_0, window_bounds = array<i64: 2, 16, 32>}, {pipeline_mode = #tpu.pipeline_mode<synchronous>, transform_indices = @transform_1, window_bounds = array<i64: 128, 384>}, {pipeline_mode = #tpu.pipeline_mode<synchronous>, transform_indices = @transform_2, window_bounds = array<i64: 1, 384>}, {pipeline_mode = #tpu.pipeline_mode<synchronous>, transform_indices = @transform_3, window_bounds = array<i64: 384, 32>}, {pipeline_mode = #tpu.pipeline_mode<synchronous>, transform_indices = @transform_4, window_bounds = array<i64: 1, 32>}, {pipeline_mode = #tpu.pipeline_mode<synchronous>, transform_indices = @transform_5, window_bounds = array<i64: 2, 32>}]} {
    %c0 = arith.constant 0 : index
    %c0_0 = arith.constant 0 : index
    %c0_1 = arith.constant 0 : index
    %0 = vector.load %arg1[%c0, %c0_0, %c0_1] : memref<2x16x32xf32, #tpu.memory_space<vmem>>, vector<2x16x32xf32>
    %1 = vector.shape_cast %0 : vector<2x16x32xf32> to vector<32x32xf32>
    %c31_i32 = arith.constant 31 : i32
    %2 = tpu.dynamic_rotate %1 by %c31_i32 dim 0 : vector<32x32xf32>, i32 -> vector<32x32xf32>
    %c30_i32 = arith.constant 30 : i32
    %3 = tpu.dynamic_rotate %1 by %c30_i32 dim 0 : vector<32x32xf32>, i32 -> vector<32x32xf32>
    %c29_i32 = arith.constant 29 : i32
    %4 = tpu.dynamic_rotate %1 by %c29_i32 dim 0 : vector<32x32xf32>, i32 -> vector<32x32xf32>
    %5 = tpu.concatenate %1, %2, %3, %4 in 1 : vector<32x32xf32>, vector<32x32xf32>, vector<32x32xf32>, vector<32x32xf32> -> vector<32x128xf32>
    %6 = arith.truncf %5 : vector<32x128xf32> to vector<32x128xbf16>
    %c0_2 = arith.constant 0 : index
    %c0_3 = arith.constant 0 : index
    %7 = vector.load %arg2[%c0_2, %c0_3] : memref<128x384xbf16, #tpu.memory_space<vmem>>, vector<128x384xbf16>
    %cst = arith.constant dense<0.000000e+00> : vector<32x384xf32>
    %8 = tpu.matmul %6, %7, %cst {dimension_numbers = #tpu.dot_dimension_numbers<[1], [0], [0], [1], [0, 0, 1, 1], [], []>} : vector<32x128xbf16>, vector<128x384xbf16>, vector<32x384xf32> -> vector<32x384xf32>
    %9 = vector.shape_cast %8 : vector<32x384xf32> to vector<2x16x384xf32>
    %10 = tpu.iota {dimensions = array<i32: 1>} : vector<2x16x384xi32>
    %11 = tpu.iota {dimensions = array<i32: 2>} : vector<2x16x384xi32>
    %c0_i32 = arith.constant 0 : i32
    %12 = vector.broadcast %c0_i32 : i32 to vector<2x16x384xi32>
    %c0_i32_4 = arith.constant 0 : i32
    %13 = vector.broadcast %c0_i32_4 : i32 to vector<2x16x384xi32>
    %14 = arith.cmpi sge, %11, %13 : vector<2x16x384xi32>
    %c128_i32 = arith.constant 128 : i32
    %15 = vector.broadcast %c128_i32 : i32 to vector<2x16x384xi32>
    %16 = arith.cmpi slt, %11, %15 : vector<2x16x384xi32>
    %17 = arith.andi %14, %16 : vector<2x16x384xi1>
    %c15_i32 = arith.constant 15 : i32
    %18 = vector.broadcast %c15_i32 : i32 to vector<2x16x384xi32>
    %19 = arith.select %17, %18, %12 : vector<2x16x384xi1>, vector<2x16x384xi32>
    %c128_i32_5 = arith.constant 128 : i32
    %20 = vector.broadcast %c128_i32_5 : i32 to vector<2x16x384xi32>
    %21 = arith.cmpi sge, %11, %20 : vector<2x16x384xi32>
    %c256_i32 = arith.constant 256 : i32
    %22 = vector.broadcast %c256_i32 : i32 to vector<2x16x384xi32>
    %23 = arith.cmpi slt, %11, %22 : vector<2x16x384xi32>
    %24 = arith.andi %21, %23 : vector<2x16x384xi1>
    %c14_i32 = arith.constant 14 : i32
    %25 = vector.broadcast %c14_i32 : i32 to vector<2x16x384xi32>
    %26 = arith.select %24, %25, %19 : vector<2x16x384xi1>, vector<2x16x384xi32>
    %c256_i32_6 = arith.constant 256 : i32
    %27 = vector.broadcast %c256_i32_6 : i32 to vector<2x16x384xi32>
    %28 = arith.cmpi sge, %11, %27 : vector<2x16x384xi32>
    %c384_i32 = arith.constant 384 : i32
    %29 = vector.broadcast %c384_i32 : i32 to vector<2x16x384xi32>
    %30 = arith.cmpi slt, %11, %29 : vector<2x16x384xi32>
    %31 = arith.andi %28, %30 : vector<2x16x384xi1>
    %c13_i32 = arith.constant 13 : i32
    %32 = vector.broadcast %c13_i32 : i32 to vector<2x16x384xi32>
    %33 = arith.select %31, %32, %26 : vector<2x16x384xi1>, vector<2x16x384xi32>
    %34 = arith.cmpi slt, %10, %33 : vector<2x16x384xi32>
    %cst_7 = arith.constant 0xFF800000 : f32
    %35 = vector.broadcast %cst_7 : f32 to vector<2x16x384xf32>
    %36 = arith.select %34, %9, %35 : vector<2x16x384xi1>, vector<2x16x384xf32>
    %cst_8 = arith.constant dense<0xFF800000> : vector<2x384xf32>
    %37 = vector.multi_reduction <maximumf>, %36, %cst_8 [1] : vector<2x16x384xf32> to vector<2x384xf32>
    %c0_9 = arith.constant 0 : index
    %c0_10 = arith.constant 0 : index
    %38 = vector.load %arg3[%c0_9, %c0_10] : memref<1x384xf32, #tpu.memory_space<vmem>>, vector<1x384xf32>
    %39 = vector.broadcast %38 : vector<1x384xf32> to vector<2x384xf32>
    %40 = arith.addf %37, %39 : vector<2x384xf32>
    %cst_11 = arith.constant 0.000000e+00 : f32
    %41 = vector.broadcast %cst_11 : f32 to vector<2x384xf32>
    %42 = arith.maximumf %40, %41 : vector<2x384xf32>
    %43 = arith.truncf %42 : vector<2x384xf32> to vector<2x384xbf16>
    %c0_12 = arith.constant 0 : index
    %c0_13 = arith.constant 0 : index
    %44 = vector.load %arg4[%c0_12, %c0_13] : memref<384x32xbf16, #tpu.memory_space<vmem>>, vector<384x32xbf16>
    %cst_14 = arith.constant dense<0.000000e+00> : vector<2x32xf32>
    %45 = tpu.matmul %43, %44, %cst_14 {dimension_numbers = #tpu.dot_dimension_numbers<[1], [0], [0], [1], [0, 0, 1, 1], [], []>} : vector<2x384xbf16>, vector<384x32xbf16>, vector<2x32xf32> -> vector<2x32xf32>
    %c0_15 = arith.constant 0 : index
    %c0_16 = arith.constant 0 : index
    %46 = vector.load %arg5[%c0_15, %c0_16] : memref<1x32xf32, #tpu.memory_space<vmem>>, vector<1x32xf32>
    %47 = vector.broadcast %46 : vector<1x32xf32> to vector<2x32xf32>
    %48 = arith.addf %45, %47 : vector<2x32xf32>
    %c0_17 = arith.constant 0 : index
    %c0_18 = arith.constant 0 : index
    %49 = vector.load %arg6[%c0_17, %c0_18] : memref<2x32xf32, #tpu.memory_space<vmem>>, vector<2x32xf32>
    tpu.vector_store %arg6[%c0_17, %c0_18], %48 {strides = array<i32>} : memref<2x32xf32, #tpu.memory_space<vmem>>, vector<2x32xf32>,
    return
  }
  func.func @transform_0(%arg0: i32) -> (i32, i32, i32) {
    %c0_i32 = arith.constant 0 : i32
    %c0_i32_0 = arith.constant 0 : i32
    %c0_i32_1 = arith.constant 0 : i32
    %c0_i32_2 = arith.constant 0 : i32
    return %c0_i32, %c0_i32_0, %c0_i32_1 : i32, i32, i32
  }
  func.func @transform_1(%arg0: i32) -> (i32, i32) {
    %c0_i32 = arith.constant 0 : i32
    %c0_i32_0 = arith.constant 0 : i32
    %c0_i32_1 = arith.constant 0 : i32
    return %c0_i32, %c0_i32_0 : i32, i32
  }
  func.func @transform_2(%arg0: i32) -> (i32, i32) {
    %c0_i32 = arith.constant 0 : i32
    %c0_i32_0 = arith.constant 0 : i32
    %c0_i32_1 = arith.constant 0 : i32
    return %c0_i32, %c0_i32_0 : i32, i32
  }
  func.func @transform_3(%arg0: i32) -> (i32, i32) {
    %c0_i32 = arith.constant 0 : i32
    %c0_i32_0 = arith.constant 0 : i32
    %c0_i32_1 = arith.constant 0 : i32
    return %c0_i32, %c0_i32_0 : i32, i32
  }
  func.func @transform_4(%arg0: i32) -> (i32, i32) {
    %c0_i32 = arith.constant 0 : i32
    %c0_i32_0 = arith.constant 0 : i32
    %c0_i32_1 = arith.constant 0 : i32
    return %c0_i32, %c0_i32_0 : i32, i32
  }
  func.func @transform_5(%arg0: i32) -> (i32, i32) {
    %c0_i32 = arith.constant 0 : i32
    %c0_i32_0 = arith.constant 0 : i32
    %c0_i32_1 = arith.constant 0 : i32
    return %c0_i32, %c0_i32_0 : i32, i32
  }
}

</mosaic_0001>

<llo_original>
// kernel: tpu_custom_call.1
$region0: #{tpu_custom_call.1}
  #allocation0 [shape = 'u32[]', space=smem, size = 0x4, offset = 0x4, fixed_abs, tag = 'smem constant byte address 0x4 - core index']
  #allocation1 [shape = 'u32[144,128]{1,0:T(1,128)}', space=vmem, size = 0x12000, scoped, tag = 'internal scratch']
  %s0 = inlined_call_operand.vmem [shape: f32[2,16,32], index: 0, kind: input, shape index: {}]
  %s1 = inlined_call_operand.vmem [shape: bf16[128,384], index: 1, kind: input, shape index: {}]
  %s2 = inlined_call_operand.vmem [shape: f32[1,384], index: 2, kind: input, shape index: {}]
  %s3 = inlined_call_operand.vmem [shape: bf16[384,32], index: 3, kind: input, shape index: {}]
  %s4 = inlined_call_operand.vmem [shape: f32[1,32], index: 4, kind: input, shape index: {}]
  %s5 = inlined_call_operand.hbm [shape: f32[2,32], index: 5, kind: output, shape index: {}]
  %s6 = sld [smem:[#allocation0]]
  $region30: #{tpu_custom_call.1} parent=0
    _
  %s8 = ssub.s32 1, %s6
  %s9 = scalar_select 0, %s8, %s6
  $region1: #{tpu_custom_call.1} parent=0
    #allocation2 [shape = 'u8[1024]{0}', space=vmem, size = 0x400, scoped, tag = 'output window, operand 0, single buffered']
    #allocation3 [shape = 's32[1]{0}', space=sflag, size = 0x4, scoped, tag = 'scoped memory for tpu_custom_call.1']
    %10 = vsyncpa [#allocation3], 0
    // Predicated region
    $region2: #{tpu_custom_call.1} parent=1 // pred_check
      _
    $region3: #{tpu_custom_call.1} parent=1 // pred_check_branch
      %12 = sbr.rel (0) target = $region5
    $region4: #{tpu_custom_call.1} parent=1 // pred_region
      _
    $region5: #{tpu_custom_call.1} parent=1 // pred_fallthru
      _
    // Predicated region
    $region6: #{tpu_custom_call.1} parent=1 // pred_check
      _
    $region7: #{tpu_custom_call.1} parent=1 // pred_check_branch
      %14 = sbr.rel (0) target = $region9
    $region8: #{tpu_custom_call.1} parent=1 // pred_region
      _
    $region9: #{tpu_custom_call.1} parent=1 // pred_fallthru
      _
    // Predicated region
    $region10: #{tpu_custom_call.1} parent=1 // pred_check
      _
    $region11: #{tpu_custom_call.1} parent=1 // pred_check_branch
      %16 = sbr.rel (0) target = $region13
    $region12: #{tpu_custom_call.1} parent=1 // pred_region
      _
    $region13: #{tpu_custom_call.1} parent=1 // pred_fallthru
      _
    // Predicated region
    $region14: #{tpu_custom_call.1} parent=1 // pred_check
      _
    $region15: #{tpu_custom_call.1} parent=1 // pred_check_branch
      %18 = sbr.rel (0) target = $region17
    $region16: #{tpu_custom_call.1} parent=1 // pred_region
      _
    $region17: #{tpu_custom_call.1} parent=1 // pred_fallthru
      _
    // Predicated region
    $region18: #{tpu_custom_call.1} parent=1 // pred_check
      _
    $region19: #{tpu_custom_call.1} parent=1 // pred_check_branch
      %20 = sbr.rel (0) target = $region21
    $region20: #{tpu_custom_call.1} parent=1 // pred_region
      _
    $region21: #{tpu_custom_call.1} parent=1 // pred_fallthru
      _
    %v22 = vld [vmem:[%s0] sm:$0xff]
    %v23 = vld [vmem:[%s0 + $0x8] sm:$0xff]
    %v24 = vld [vmem:[%s0 + $0x10] sm:$0xff]
    %v25 = vld [vmem:[%s0 + $0x18] sm:$0xff]
    %v26 = vrot.slane %v22, 1
    %v27 = vrot.slane %v23, 1
    %v28 = vrot.slane %v24, 1
    %v29 = vrot.slane %v25, 1
    %v30 = vlaneseq
    %v31 = vshrl.u32 %v30, 7
    %vm32 = vcmp.lt.s32.totalorder %v31, 7
    %v33 = vsel %vm32, %v28, %v29
    %v34 = vsel %vm32, %v27, %v28
    %v35 = vsel %vm32, %v26, %v27
    %v36 = vsel %vm32, %v29, %v26
    %v37 = vrot.slane %v22, 2
    %v38 = vrot.slane %v23, 2
    %v39 = vrot.slane %v24, 2
    %v40 = vrot.slane %v25, 2
    %vm41 = vcmp.lt.s32.totalorder %v31, 6
    %v42 = vsel %vm41, %v39, %v40
    %v43 = vsel %vm41, %v38, %v39
    %v44 = vsel %vm41, %v37, %v38
    %v45 = vsel %vm41, %v40, %v37
    %v46 = vrot.slane %v22, 3
    %v47 = vrot.slane %v23, 3
    %v48 = vrot.slane %v24, 3
    %v49 = vrot.slane %v25, 3
    %vm50 = vcmp.lt.s32.totalorder %v31, 5
    %v51 = vsel %vm50, %v48, %v49
    %v52 = vsel %vm50, %v47, %v48
    %v53 = vsel %vm50, %v46, %v47
    %v54 = vsel %vm50, %v49, %v46
    %59 = vrot.lane.b32.xlu0 %v35, 32
    %v60 = vpop.permute.xlu0 %59
    %61 = vrot.lane.b32.xlu0 %v34, 32
    %v62 = vpop.permute.xlu0 %61
    %63 = vrot.lane.b32.xlu0 %v33, 32
    %v64 = vpop.permute.xlu0 %63
    %65 = vrot.lane.b32.xlu0 %v36, 32
    %v66 = vpop.permute.xlu0 %65
    %75 = vrot.lane.b32.xlu0 %v44, 64
    %v76 = vpop.permute.xlu0 %75
    %77 = vrot.lane.b32.xlu0 %v43, 64
    %v78 = vpop.permute.xlu0 %77
    %79 = vrot.lane.b32.xlu0 %v42, 64
    %v80 = vpop.permute.xlu0 %79
    %81 = vrot.lane.b32.xlu0 %v45, 64
    %v82 = vpop.permute.xlu0 %81
    %91 = vrot.lane.b32.xlu0 %v53, 96
    %v92 = vpop.permute.xlu0 %91
    %93 = vrot.lane.b32.xlu0 %v52, 96
    %v94 = vpop.permute.xlu0 %93
    %95 = vrot.lane.b32.xlu0 %v51, 96
    %v96 = vpop.permute.xlu0 %95
    %97 = vrot.lane.b32.xlu0 %v54, 96
    %v98 = vpop.permute.xlu0 %97
    %vm103 = vcmask 261120
    %v104 = vsel %vm103, %v22, %v60
    %v105 = vsel %vm103, %v23, %v62
    %v106 = vsel %vm103, %v24, %v64
    %v107 = vsel %vm103, %v25, %v66
    %vm108 = vcmask 523264
    %v109 = vsel %vm108, %v104, %v76
    %v110 = vsel %vm108, %v105, %v78
    %v111 = vsel %vm108, %v106, %v80
    %v112 = vsel %vm108, %v107, %v82
    %vm113 = vcmask 785408
    %v114 = vsel %vm113, %v109, %v92
    %v115 = vsel %vm113, %v110, %v94
    %v116 = vsel %vm113, %v111, %v96
    %v117 = vsel %vm113, %v112, %v98
    %v118 = vpack.c.bf16 %v115, %v114
    %v119 = vpack.c.bf16 %v117, %v116
    %v120 = vld [vmem:[%s1] sm:$0xff]
    %v121 = vld [vmem:[%s1 + $0x8] sm:$0xf]
    %v122 = vld [vmem:[%s1 + $0xc] sm:$0xff]
    %v123 = vld [vmem:[%s1 + $0x14] sm:$0xf]
    %v124 = vld [vmem:[%s1 + $0x18] sm:$0xff]
    %v125 = vld [vmem:[%s1 + $0x20] sm:$0xf]
    %v126 = vld [vmem:[%s1 + $0x24] sm:$0xff]
    %v127 = vld [vmem:[%s1 + $0x2c] sm:$0xf]
    %v128 = vld [vmem:[%s1 + $0x30] sm:$0xff]
    %v129 = vld [vmem:[%s1 + $0x38] sm:$0xf]
    %v130 = vld [vmem:[%s1 + $0x3c] sm:$0xff]
    %v131 = vld [vmem:[%s1 + $0x44] sm:$0xf]
    %v132 = vld [vmem:[%s1 + $0x48] sm:$0xff]
    %v133 = vld [vmem:[%s1 + $0x50] sm:$0xf]
    %v134 = vld [vmem:[%s1 + $0x54] sm:$0xff]
    %v135 = vld [vmem:[%s1 + $0x5c] sm:$0xf]
    %v136 = vld [vmem:[%s1 + $0x60] sm:$0xff]
    %v137 = vld [vmem:[%s1 + $0x68] sm:$0xf]
    %v138 = vld [vmem:[%s1 + $0x6c] sm:$0xff]
    %v139 = vld [vmem:[%s1 + $0x74] sm:$0xf]
    %v140 = vld [vmem:[%s1 + $0x78] sm:$0xff]
    %v141 = vld [vmem:[%s1 + $0x80] sm:$0xf]
    %v142 = vld [vmem:[%s1 + $0x84] sm:$0xff]
    %v143 = vld [vmem:[%s1 + $0x8c] sm:$0xf]
    %v144 = vld [vmem:[%s1 + $0x90] sm:$0xff]
    %v145 = vld [vmem:[%s1 + $0x98] sm:$0xf]
    %v146 = vld [vmem:[%s1 + $0x9c] sm:$0xff]
    %v147 = vld [vmem:[%s1 + $0xa4] sm:$0xf]
    %v148 = vld [vmem:[%s1 + $0xa8] sm:$0xff]
    %v149 = vld [vmem:[%s1 + $0xb0] sm:$0xf]
    %v150 = vld [vmem:[%s1 + $0xb4] sm:$0xff]
    %v151 = vld [vmem:[%s1 + $0xbc] sm:$0xf]
    %v184 = vunpack.c.l.b16 %v120
    %v185 = vunpack.c.h.b16 %v120
    %v186 = vunpack.c.l.b16 %v121
    %v187 = vunpack.c.l.b16 %v122
    %v188 = vunpack.c.h.b16 %v122
    %v189 = vunpack.c.l.b16 %v123
    %v190 = vunpack.c.l.b16 %v124
    %v191 = vunpack.c.h.b16 %v124
    %v192 = vunpack.c.l.b16 %v125
    %v193 = vunpack.c.l.b16 %v126
    %v194 = vunpack.c.h.b16 %v126
    %v195 = vunpack.c.l.b16 %v127
    %v196 = vunpack.c.l.b16 %v128
    %v197 = vunpack.c.h.b16 %v128
    %v198 = vunpack.c.l.b16 %v129
    %v199 = vunpack.c.l.b16 %v130
    %v200 = vunpack.c.h.b16 %v130
    %v201 = vunpack.c.l.b16 %v131
    %v202 = vunpack.c.l.b16 %v132
    %v203 = vunpack.c.h.b16 %v132
    %v204 = vunpack.c.l.b16 %v133
    %v205 = vunpack.c.l.b16 %v134
    %v206 = vunpack.c.h.b16 %v134
    %v207 = vunpack.c.l.b16 %v135
    %v208 = vunpack.c.l.b16 %v136
    %v209 = vunpack.c.h.b16 %v136
    %v210 = vunpack.c.l.b16 %v137
    %v211 = vunpack.c.l.b16 %v138
    %v212 = vunpack.c.h.b16 %v138
    %v213 = vunpack.c.l.b16 %v139
    %v214 = vunpack.c.l.b16 %v140
    %v215 = vunpack.c.h.b16 %v140
    %v216 = vunpack.c.l.b16 %v141
    %v217 = vunpack.c.l.b16 %v142
    %v218 = vunpack.c.h.b16 %v142
    %v219 = vunpack.c.l.b16 %v143
    %v220 = vunpack.c.l.b16 %v144
    %v221 = vunpack.c.h.b16 %v144
    %v222 = vunpack.c.l.b16 %v145
    %v223 = vunpack.c.l.b16 %v146
    %v224 = vunpack.c.h.b16 %v146
    %v225 = vunpack.c.l.b16 %v147
    %v226 = vunpack.c.l.b16 %v148
    %v227 = vunpack.c.h.b16 %v148
    %v228 = vunpack.c.l.b16 %v149
    %v229 = vunpack.c.l.b16 %v150
    %v230 = vunpack.c.h.b16 %v150
    %v231 = vunpack.c.l.b16 %v151
    %v232 = vpack.c.b16 %v187, %v184
    %v233 = vpack.c.b16 %v188, %v185
    %v234 = vpack.c.b16 %v189, %v186
    %v235 = vpack.c.b16 %v193, %v190
    %v236 = vpack.c.b16 %v194, %v191
    %v237 = vpack.c.b16 %v195, %v192
    %v238 = vpack.c.b16 %v199, %v196
    %v239 = vpack.c.b16 %v200, %v197
    %v240 = vpack.c.b16 %v201, %v198
    %v241 = vpack.c.b16 %v205, %v202
    %v242 = vpack.c.b16 %v206, %v203
    %v243 = vpack.c.b16 %v207, %v204
    %v244 = vpack.c.b16 %v211, %v208
    %v245 = vpack.c.b16 %v212, %v209
    %v246 = vpack.c.b16 %v213, %v210
    %v247 = vpack.c.b16 %v217, %v214
    %v248 = vpack.c.b16 %v218, %v215
    %v249 = vpack.c.b16 %v219, %v216
    %v250 = vpack.c.b16 %v223, %v220
    %v251 = vpack.c.b16 %v224, %v221
    %v252 = vpack.c.b16 %v225, %v222
    %v253 = vpack.c.b16 %v229, %v226
    %v254 = vpack.c.b16 %v230, %v227
    %v255 = vpack.c.b16 %v231, %v228
    %280 = vmatprep.subr.bf16.mxu0 %v233
    %281 = vmatpush1.bf16.msra.mxu0 %v232
    %282 = vmatprep.subr.bf16.mxu0 %v236
    %283 = vmatpush1.bf16.msra.mxu0 %v235
    %284 = vmatprep.subr.bf16.mxu0 %v239
    %285 = vmatpush1.bf16.msra.mxu0 %v238
    %286 = vmatprep.subr.bf16.mxu0 %v242
    %287 = vmatpush1.bf16.msra.mxu0 %v241
    %288 = vmatprep.subr.bf16.mxu0 %v245
    %289 = vmatpush1.bf16.msra.mxu0 %v244
    %290 = vmatprep.subr.bf16.mxu0 %v248
    %291 = vmatpush1.bf16.msra.mxu0 %v247
    %292 = vmatprep.subr.bf16.mxu0 %v251
    %293 = vmatpush1.bf16.msra.mxu0 %v250
    %294 = vmatprep.subr.bf16.mxu0 %v254
    %295 = vmatpush1.bf16.msra.mxu0 %v253
    %296 = vmatprep.subr.bf16.mxu0 0
    %297 = vmatpush1.bf16.msra.mxu0 0
    %298 = vmatprep.subr.bf16.mxu0 0
    %299 = vmatpush1.bf16.msra.mxu0 0
    %300 = vmatprep.subr.bf16.mxu0 0
    %301 = vmatpush1.bf16.msra.mxu0 0
    %302 = vmatprep.subr.bf16.mxu0 0
    %303 = vmatpush1.bf16.msra.mxu0 0
    %304 = vmatprep.subr.bf16.mxu0 0
    %305 = vmatpush1.bf16.msra.mxu0 0
    %306 = vmatprep.subr.bf16.mxu0 0
    %307 = vmatpush1.bf16.msra.mxu0 0
    %308 = vmatprep.subr.bf16.mxu0 0
    %309 = vmatpush1.bf16.msra.mxu0 0
    %310 = vmatprep.subr.bf16.mxu0 0
    %311 = vmatpush1.bf16.msra.mxu0 0
    %312 = vmatprep.mubr.bf16.mxu0 0
    %313 = vmatmul.mubr.bf16.gmra.mrb[0].mxu0 %v118
    %v314 = vpop.f32.mrb[0].mxu0
    %v315 = vadd.f32 0.0, %v314
    %v316 = vpop.f32.mrb[0].mxu0
    %v317 = vadd.f32 0.0, %v316
    %v318 = vpop.f32.mrb[0].mxu0
    %v319 = vadd.f32 0.0, %v318
    %v320 = vpop.f32.mrb[0].mxu0
    %v321 = vadd.f32 0.0, %v320
    %322 = vmatprep.mubr.bf16.mxu0 0
    %323 = vmatmul.mubr.bf16.gmra.mrb[0].mxu0 %v119
    %v324 = vpop.f32.mrb[0].mxu0
    %v325 = vadd.f32 0.0, %v324
    %v326 = vpop.f32.mrb[0].mxu0
    %v327 = vadd.f32 0.0, %v326
    %v328 = vpop.f32.mrb[0].mxu0
    %v329 = vadd.f32 0.0, %v328
    %v330 = vpop.f32.mrb[0].mxu0
    %v331 = vadd.f32 0.0, %v330
    %332 = vdwg.mxu0
    %333 = vmatprep.subr.bf16.mxu0 0
    %334 = vmatpush1.bf16.msra.mxu0 %v234
    %335 = vmatprep.subr.bf16.mxu0 0
    %336 = vmatpush1.bf16.msra.mxu0 %v237
    %337 = vmatprep.subr.bf16.mxu0 0
    %338 = vmatpush1.bf16.msra.mxu0 %v240
    %339 = vmatprep.subr.bf16.mxu0 0
    %340 = vmatpush1.bf16.msra.mxu0 %v243
    %341 = vmatprep.subr.bf16.mxu0 0
    %342 = vmatpush1.bf16.msra.mxu0 %v246
    %343 = vmatprep.subr.bf16.mxu0 0
    %344 = vmatpush1.bf16.msra.mxu0 %v249
    %345 = vmatprep.subr.bf16.mxu0 0
    %346 = vmatpush1.bf16.msra.mxu0 %v252
    %347 = vmatprep.subr.bf16.mxu0 0
    %348 = vmatpush1.bf16.msra.mxu0 %v255
    %349 = vmatprep.subr.bf16.mxu0 0
    %350 = vmatpush1.bf16.msra.mxu0 0
    %351 = vmatprep.subr.bf16.mxu0 0
    %352 = vmatpush1.bf16.msra.mxu0 0
    %353 = vmatprep.subr.bf16.mxu0 0
    %354 = vmatpush1.bf16.msra.mxu0 0
    %355 = vmatprep.subr.bf16.mxu0 0
    %356 = vmatpush1.bf16.msra.mxu0 0
    %357 = vmatprep.subr.bf16.mxu0 0
    %358 = vmatpush1.bf16.msra.mxu0 0
    %359 = vmatprep.subr.bf16.mxu0 0
    %360 = vmatpush1.bf16.msra.mxu0 0
    %361 = vmatprep.subr.bf16.mxu0 0
    %362 = vmatpush1.bf16.msra.mxu0 0
    %363 = vmatprep.subr.bf16.mxu0 0
    %364 = vmatpush1.bf16.msra.mxu0 0
    %365 = vmatprep.mubr.bf16.mxu0 0
    %366 = vmatmul.mubr.bf16.gmra.mrb[0].mxu0 %v118
    %v367 = vpop.f32.mrb[0].mxu0
    %v368 = vadd.f32 0.0, %v367
    %v369 = vpop.f32.mrb[0].mxu0
    %v370 = vpop.f32.mrb[0].mxu0
    %v371 = vadd.f32 0.0, %v370
    %v372 = vpop.f32.mrb[0].mxu0
    %373 = vmatprep.mubr.bf16.mxu0 0
    %374 = vmatmul.mubr.bf16.gmra.mrb[0].mxu0 %v119
    %v375 = vpop.f32.mrb[0].mxu0
    %v376 = vadd.f32 0.0, %v375
    %v377 = vpop.f32.mrb[0].mxu0
    %v378 = vpop.f32.mrb[0].mxu0
    %v379 = vadd.f32 0.0, %v378
    %v380 = vpop.f32.mrb[0].mxu0
    %381 = vdwg.mxu0
    %v382 = vadd.s32 %v31, 8
    %v383 = vlaneseq
    %v384 = vand.u32 %v383, 127
    %v385 = vadd.s32 %v384, 128
    %v386 = vadd.s32 %v384, 256
    %vm387 = vcmp.ge.s32.totalorder %v384, 0
    %vm388 = vcmp.ge.s32.totalorder %v385, 0
    %vm389 = vcmp.ge.s32.totalorder %v386, 0
    %vm390 = vcmp.lt.s32.totalorder %v384, 128
    %vm391 = vcmp.lt.s32.totalorder %v385, 128
    %vm392 = vcmp.lt.s32.totalorder %v386, 128
    %vm393 = vmand %vm387, %vm390
    %vm394 = vmand %vm388, %vm391
    %vm395 = vmand %vm389, %vm392
    %v396 = vsel %vm393, 15, 0
    %v397 = vsel %vm394, 15, 0
    %v398 = vsel %vm395, 15, 0
    %vm399 = vcmp.ge.s32.totalorder %v384, 128
    %vm400 = vcmp.ge.s32.totalorder %v385, 128
    %vm401 = vcmp.ge.s32.totalorder %v386, 128
    %vm402 = vcmp.lt.s32.totalorder %v384, 256
    %vm403 = vcmp.lt.s32.totalorder %v385, 256
    %vm404 = vcmp.lt.s32.totalorder %v386, 256
    %vm405 = vmand %vm399, %vm402
    %vm406 = vmand %vm400, %vm403
    %vm407 = vmand %vm401, %vm404
    %v408 = vsel %vm405, 14, %v396
    %v409 = vsel %vm406, 14, %v397
    %v410 = vsel %vm407, 14, %v398
    %vm411 = vcmp.ge.s32.totalorder %v384, 256
    %vm412 = vcmp.ge.s32.totalorder %v385, 256
    %vm413 = vcmp.ge.s32.totalorder %v386, 256
    %vm414 = vcmp.lt.s32.totalorder %v384, 384
    %vm415 = vcmp.lt.s32.totalorder %v385, 384
    %vm416 = vcmp.lt.s32.totalorder %v386, 384
    %vm417 = vmand %vm411, %vm414
    %vm418 = vmand %vm412, %vm415
    %vm419 = vmand %vm413, %vm416
    %v420 = vsel %vm417, 13, %v408
    %v421 = vsel %vm418, 13, %v409
    %v422 = vsel %vm419, 13, %v410
    %vm423 = vcmp.lt.s32.totalorder %v31, %v420
    %vm424 = vcmp.lt.s32.totalorder %v31, %v421
    %vm425 = vcmp.lt.s32.totalorder %v31, %v422
    %vm426 = vcmp.lt.s32.totalorder %v382, %v420
    %vm427 = vcmp.lt.s32.totalorder %v382, %v421
    %vm428 = vcmp.lt.s32.totalorder %v382, %v422
    %v429 = vsel %vm423, %v315, -inf
    %v430 = vsel %vm424, %v317, -inf
    %v431 = vsel %vm425, %v368, -inf
    %v432 = vsel %vm426, %v319, -inf
    %v433 = vsel %vm427, %v321, -inf
    %v434 = vsel %vm428, %v371, -inf
    %v435 = vsel %vm423, %v325, -inf
    %v436 = vsel %vm424, %v327, -inf
    %v437 = vsel %vm425, %v376, -inf
    %v438 = vsel %vm426, %v329, -inf
    %v439 = vsel %vm427, %v331, -inf
    %v440 = vsel %vm428, %v379, -inf
    %v441 = vmax.f32 %v429, %v432
    %v442 = vrot.slane %v441, 4
    %v443 = vmax.f32 %v441, %v442
    %v444 = vrot.slane %v443, 2
    %v445 = vmax.f32 %v443, %v444
    %v446 = vrot.slane %v445, 1
    %v447 = vmax.f32 %v445, %v446
    %v448 = vmax.f32 %v430, %v433
    %v449 = vrot.slane %v448, 4
    %v450 = vmax.f32 %v448, %v449
    %v451 = vrot.slane %v450, 2
    %v452 = vmax.f32 %v450, %v451
    %v453 = vrot.slane %v452, 1
    %v454 = vmax.f32 %v452, %v453
    %v455 = vmax.f32 %v431, %v434
    %v456 = vrot.slane %v455, 4
    %v457 = vmax.f32 %v455, %v456
    %v458 = vrot.slane %v457, 2
    %v459 = vmax.f32 %v457, %v458
    %v460 = vrot.slane %v459, 1
    %v461 = vmax.f32 %v459, %v460
    %v462 = vmax.f32 %v435, %v438
    %v463 = vrot.slane %v462, 4
    %v464 = vmax.f32 %v462, %v463
    %v465 = vrot.slane %v464, 2
    %v466 = vmax.f32 %v464, %v465
    %v467 = vrot.slane %v466, 1
    %v468 = vmax.f32 %v466, %v467
    %v469 = vmax.f32 %v436, %v439
    %v470 = vrot.slane %v469, 4
    %v471 = vmax.f32 %v469, %v470
    %v472 = vrot.slane %v471, 2
    %v473 = vmax.f32 %v471, %v472
    %v474 = vrot.slane %v473, 1
    %v475 = vmax.f32 %v473, %v474
    %v476 = vmax.f32 %v437, %v440
    %v477 = vrot.slane %v476, 4
    %v478 = vmax.f32 %v476, %v477
    %v479 = vrot.slane %v478, 2
    %v480 = vmax.f32 %v478, %v479
    %v481 = vrot.slane %v480, 1
    %v482 = vmax.f32 %v480, %v481
    %v483 = vld [vmem:[%s2] sm:$0x7]
    %v485 = vlaneseq
    %v486 = vshrl.u32 %v485, 7
    %v487 = vsub.s32 0, %v486
    %v488 = vrot.slane %v483, %v487
    %v489 = vlaneseq
    %v490 = vshrl.u32 %v489, 7
    %v491 = vsub.s32 1, %v490
    %v492 = vrot.slane %v483, %v491
    %v493 = vlaneseq
    %v494 = vshrl.u32 %v493, 7
    %v495 = vsub.s32 2, %v494
    %v496 = vrot.slane %v483, %v495
    %v500 = vadd.f32 %v447, %v488
    %v501 = vadd.f32 %v454, %v492
    %v502 = vadd.f32 %v461, %v496
    %v503 = vadd.f32 %v468, %v488
    %v504 = vadd.f32 %v475, %v492
    %v505 = vadd.f32 %v482, %v496
    %v506 = vmax.f32 %v500, 0.0
    %v507 = vmax.f32 %v501, 0.0
    %v508 = vmax.f32 %v502, 0.0
    %v509 = vmax.f32 %v503, 0.0
    %v510 = vmax.f32 %v504, 0.0
    %v511 = vmax.f32 %v505, 0.0
    %v512 = vpack.c.bf16 %v506, %v506
    %v513 = vpack.c.bf16 %v507, %v507
    %v514 = vpack.c.bf16 %v508, %v508
    %v515 = vpack.c.bf16 %v509, %v509
    %v516 = vpack.c.bf16 %v510, %v510
    %v517 = vpack.c.bf16 %v511, %v511
    %v518 = vld [vmem:[%s3] sm:$0xf]
    %v519 = vld [vmem:[%s3 + $0x4] sm:$0xf]
    %v520 = vld [vmem:[%s3 + $0x8] sm:$0xf]
    %v521 = vld [vmem:[%s3 + $0xc] sm:$0xf]
    %v522 = vld [vmem:[%s3 + $0x10] sm:$0xf]
    %v523 = vld [vmem:[%s3 + $0x14] sm:$0xf]
    %v524 = vld [vmem:[%s3 + $0x18] sm:$0xf]
    %v525 = vld [vmem:[%s3 + $0x1c] sm:$0xf]
    %v526 = vld [vmem:[%s3 + $0x20] sm:$0xf]
    %v527 = vld [vmem:[%s3 + $0x24] sm:$0xf]
    %v528 = vld [vmem:[%s3 + $0x28] sm:$0xf]
    %v529 = vld [vmem:[%s3 + $0x2c] sm:$0xf]
    %v530 = vld [vmem:[%s3 + $0x30] sm:$0xf]
    %v531 = vld [vmem:[%s3 + $0x34] sm:$0xf]
    %v532 = vld [vmem:[%s3 + $0x38] sm:$0xf]
    %v533 = vld [vmem:[%s3 + $0x3c] sm:$0xf]
    %v534 = vld [vmem:[%s3 + $0x40] sm:$0xf]
    %v535 = vld [vmem:[%s3 + $0x44] sm:$0xf]
    %v536 = vld [vmem:[%s3 + $0x48] sm:$0xf]
    %v537 = vld [vmem:[%s3 + $0x4c] sm:$0xf]
    %v538 = vld [vmem:[%s3 + $0x50] sm:$0xf]
    %v539 = vld [vmem:[%s3 + $0x54] sm:$0xf]
    %v540 = vld [vmem:[%s3 + $0x58] sm:$0xf]
    %v541 = vld [vmem:[%s3 + $0x5c] sm:$0xf]
    %v542 = vld [vmem:[%s3 + $0x60] sm:$0xf]
    %v543 = vld [vmem:[%s3 + $0x64] sm:$0xf]
    %v544 = vld [vmem:[%s3 + $0x68] sm:$0xf]
    %v545 = vld [vmem:[%s3 + $0x6c] sm:$0xf]
    %v546 = vld [vmem:[%s3 + $0x70] sm:$0xf]
    %v547 = vld [vmem:[%s3 + $0x74] sm:$0xf]
    %v548 = vld [vmem:[%s3 + $0x78] sm:$0xf]
    %v549 = vld [vmem:[%s3 + $0x7c] sm:$0xf]
    %v550 = vld [vmem:[%s3 + $0x80] sm:$0xf]
    %v551 = vld [vmem:[%s3 + $0x84] sm:$0xf]
    %v552 = vld [vmem:[%s3 + $0x88] sm:$0xf]
    %v553 = vld [vmem:[%s3 + $0x8c] sm:$0xf]
    %v554 = vld [vmem:[%s3 + $0x90] sm:$0xf]
    %v555 = vld [vmem:[%s3 + $0x94] sm:$0xf]
    %v556 = vld [vmem:[%s3 + $0x98] sm:$0xf]
    %v557 = vld [vmem:[%s3 + $0x9c] sm:$0xf]
    %v558 = vld [vmem:[%s3 + $0xa0] sm:$0xf]
    %v559 = vld [vmem:[%s3 + $0xa4] sm:$0xf]
    %v560 = vld [vmem:[%s3 + $0xa8] sm:$0xf]
    %v561 = vld [vmem:[%s3 + $0xac] sm:$0xf]
    %v562 = vld [vmem:[%s3 + $0xb0] sm:$0xf]
    %v563 = vld [vmem:[%s3 + $0xb4] sm:$0xf]
    %v564 = vld [vmem:[%s3 + $0xb8] sm:$0xf]
    %v565 = vld [vmem:[%s3 + $0xbc] sm:$0xf]
    %v566 = vld [vmem:[%s4] sm:$0x1]
    %v568 = vlaneseq
    %v569 = vshrl.u32 %v568, 7
    %v570 = vsub.s32 0, %v569
    %v571 = vrot.slane %v566, %v570
    %v579 = vunpack.c.l.b16 %v512
    %v580 = vunpack.c.l.b16 %v513
    %v581 = vunpack.c.l.b16 %v514
    %v582 = vunpack.c.l.b16 %v515
    %v583 = vunpack.c.l.b16 %v516
    %v584 = vunpack.c.l.b16 %v517
    %v585 = vrot.slane %v582, 7
    %vm586 = vcmask 1041409
    %v587 = vsel %vm586, %v585, %v579
    %v588 = vrot.slane %v583, 7
    %v589 = vsel %vm586, %v588, %v580
    %v590 = vrot.slane %v584, 7
    %v591 = vsel %vm586, %v590, %v581
    %v592 = vpack.c.b16 %v587, %v587
    %v593 = vpack.c.b16 %v589, %v589
    %v594 = vpack.c.b16 %v591, %v591
    %v646 = vunpack.c.l.b16 %v518
    %v647 = vunpack.c.l.b16 %v519
    %v648 = vunpack.c.l.b16 %v520
    %v649 = vunpack.c.l.b16 %v521
    %v650 = vunpack.c.l.b16 %v522
    %v651 = vunpack.c.l.b16 %v523
    %v652 = vunpack.c.l.b16 %v524
    %v653 = vunpack.c.l.b16 %v525
    %v654 = vunpack.c.l.b16 %v526
    %v655 = vunpack.c.l.b16 %v527
    %v656 = vunpack.c.l.b16 %v528
    %v657 = vunpack.c.l.b16 %v529
    %v658 = vunpack.c.l.b16 %v530
    %v659 = vunpack.c.l.b16 %v531
    %v660 = vunpack.c.l.b16 %v532
    %v661 = vunpack.c.l.b16 %v533
    %v662 = vunpack.c.l.b16 %v534
    %v663 = vunpack.c.l.b16 %v535
    %v664 = vunpack.c.l.b16 %v536
    %v665 = vunpack.c.l.b16 %v537
    %v666 = vunpack.c.l.b16 %v538
    %v667 = vunpack.c.l.b16 %v539
    %v668 = vunpack.c.l.b16 %v540
    %v669 = vunpack.c.l.b16 %v541
    %v670 = vunpack.c.l.b16 %v542
    %v671 = vunpack.c.l.b16 %v543
    %v672 = vunpack.c.l.b16 %v544
    %v673 = vunpack.c.l.b16 %v545
    %v674 = vunpack.c.l.b16 %v546
    %v675 = vunpack.c.l.b16 %v547
    %v676 = vunpack.c.l.b16 %v548
    %v677 = vunpack.c.l.b16 %v549
    %v678 = vunpack.c.l.b16 %v550
    %v679 = vunpack.c.l.b16 %v551
    %v680 = vunpack.c.l.b16 %v552
    %v681 = vunpack.c.l.b16 %v553
    %v682 = vunpack.c.l.b16 %v554
    %v683 = vunpack.c.l.b16 %v555
    %v684 = vunpack.c.l.b16 %v556
    %v685 = vunpack.c.l.b16 %v557
    %v686 = vunpack.c.l.b16 %v558
    %v687 = vunpack.c.l.b16 %v559
    %v688 = vunpack.c.l.b16 %v560
    %v689 = vunpack.c.l.b16 %v561
    %v690 = vunpack.c.l.b16 %v562
    %v691 = vunpack.c.l.b16 %v563
    %v692 = vunpack.c.l.b16 %v564
    %v693 = vunpack.c.l.b16 %v565
    %v694 = vpack.c.b16 %v647, %v646
    %v695 = vpack.c.b16 %v649, %v648
    %v696 = vpack.c.b16 %v651, %v650
    %v697 = vpack.c.b16 %v653, %v652
    %v698 = vpack.c.b16 %v655, %v654
    %v699 = vpack.c.b16 %v657, %v656
    %v700 = vpack.c.b16 %v659, %v658
    %v701 = vpack.c.b16 %v661, %v660
    %v702 = vpack.c.b16 %v663, %v662
    %v703 = vpack.c.b16 %v665, %v664
    %v704 = vpack.c.b16 %v667, %v666
    %v705 = vpack.c.b16 %v669, %v668
    %v706 = vpack.c.b16 %v671, %v670
    %v707 = vpack.c.b16 %v673, %v672
    %v708 = vpack.c.b16 %v675, %v674
    %v709 = vpack.c.b16 %v677, %v676
    %v710 = vpack.c.b16 %v679, %v678
    %v711 = vpack.c.b16 %v681, %v680
    %v712 = vpack.c.b16 %v683, %v682
    %v713 = vpack.c.b16 %v685, %v684
    %v714 = vpack.c.b16 %v687, %v686
    %v715 = vpack.c.b16 %v689, %v688
    %v716 = vpack.c.b16 %v691, %v690
    %v717 = vpack.c.b16 %v693, %v692
    %742 = vmatprep.subr.bf16.mxu0 0
    %743 = vmatpush1.bf16.msra.mxu0 %v694
    %744 = vmatprep.subr.bf16.mxu0 0
    %745 = vmatpush1.bf16.msra.mxu0 %v695
    %746 = vmatprep.subr.bf16.mxu0 0
    %747 = vmatpush1.bf16.msra.mxu0 %v696
    %748 = vmatprep.subr.bf16.mxu0 0
    %749 = vmatpush1.bf16.msra.mxu0 %v697
    %750 = vmatprep.subr.bf16.mxu0 0
    %751 = vmatpush1.bf16.msra.mxu0 %v698
    %752 = vmatprep.subr.bf16.mxu0 0
    %753 = vmatpush1.bf16.msra.mxu0 %v699
    %754 = vmatprep.subr.bf16.mxu0 0
    %755 = vmatpush1.bf16.msra.mxu0 %v700
    %756 = vmatprep.subr.bf16.mxu0 0
    %757 = vmatpush1.bf16.msra.mxu0 %v701
    %758 = vmatprep.subr.bf16.mxu0 0
    %759 = vmatpush1.bf16.msra.mxu0 %v702
    %760 = vmatprep.subr.bf16.mxu0 0
    %761 = vmatpush1.bf16.msra.mxu0 %v703
    %762 = vmatprep.subr.bf16.mxu0 0
    %763 = vmatpush1.bf16.msra.mxu0 %v704
    %764 = vmatprep.subr.bf16.mxu0 0
    %765 = vmatpush1.bf16.msra.mxu0 %v705
    %766 = vmatprep.subr.bf16.mxu0 0
    %767 = vmatpush1.bf16.msra.mxu0 %v706
    %768 = vmatprep.subr.bf16.mxu0 0
    %769 = vmatpush1.bf16.msra.mxu0 %v707
    %770 = vmatprep.subr.bf16.mxu0 0
    %771 = vmatpush1.bf16.msra.mxu0 %v708
    %772 = vmatprep.subr.bf16.mxu0 0
    %773 = vmatpush1.bf16.msra.mxu0 %v709
    %774 = vmatprep.mubr.bf16.mxu0 %v593
    %775 = vmatmul.mubr.bf16.gmra.mrb[0].mxu0 %v592
    %v776 = vpop.f32.mrb[0].mxu0
    %v777 = vadd.f32 %v571, %v776
    %v778 = vpop.f32.mrb[0].mxu0
    %v779 = vpop.f32.mrb[0].mxu0
    %v780 = vpop.f32.mrb[0].mxu0
    %781 = vdwg.mxu0
    %782 = vmatprep.subr.bf16.mxu0 0
    %783 = vmatpush1.bf16.msra.mxu0 %v710
    %784 = vmatprep.subr.bf16.mxu0 0
    %785 = vmatpush1.bf16.msra.mxu0 %v711
    %786 = vmatprep.subr.bf16.mxu0 0
    %787 = vmatpush1.bf16.msra.mxu0 %v712
    %788 = vmatprep.subr.bf16.mxu0 0
    %789 = vmatpush1.bf16.msra.mxu0 %v713
    %790 = vmatprep.subr.bf16.mxu0 0
    %791 = vmatpush1.bf16.msra.mxu0 %v714
    %792 = vmatprep.subr.bf16.mxu0 0
    %793 = vmatpush1.bf16.msra.mxu0 %v715
    %794 = vmatprep.subr.bf16.mxu0 0
    %795 = vmatpush1.bf16.msra.mxu0 %v716
    %796 = vmatprep.subr.bf16.mxu0 0
    %797 = vmatpush1.bf16.msra.mxu0 %v717
    %798 = vmatprep.subr.bf16.mxu0 0
    %799 = vmatpush1.bf16.msra.mxu0 0
    %800 = vmatprep.subr.bf16.mxu0 0
    %801 = vmatpush1.bf16.msra.mxu0 0
    %802 = vmatprep.subr.bf16.mxu0 0
    %803 = vmatpush1.bf16.msra.mxu0 0
    %804 = vmatprep.subr.bf16.mxu0 0
    %805 = vmatpush1.bf16.msra.mxu0 0
    %806 = vmatprep.subr.bf16.mxu0 0
    %807 = vmatpush1.bf16.msra.mxu0 0
    %808 = vmatprep.subr.bf16.mxu0 0
    %809 = vmatpush1.bf16.msra.mxu0 0
    %810 = vmatprep.subr.bf16.mxu0 0
    %811 = vmatpush1.bf16.msra.mxu0 0
    %812 = vmatprep.subr.bf16.mxu0 0
    %813 = vmatpush1.bf16.msra.mxu0 0
    %814 = vmatprep.mubr.bf16.mxu0 0
    %815 = vmatmul.mubr.bf16.gmra.mrb[0].mxu0 %v594
    %v816 = vpop.f32.mrb[0].mxu0
    %v817 = vadd.f32 %v777, %v816
    %v818 = vpop.f32.mrb[0].mxu0
    %v819 = vpop.f32.mrb[0].mxu0
    %v820 = vpop.f32.mrb[0].mxu0
    %821 = vdwg.mxu0
    %vm822 = vcmask 254976
    %823 = vst.msk [vmem:[#allocation2] sm:$0x3] %vm822, %v817
    // Predicated region
    $region22: #{tpu_custom_call.1} parent=1 // pred_check
      _
    $region23: #{tpu_custom_call.1} parent=1 // pred_check_branch
      %825 = sbr.rel (0) target = $region25
    $region24: #{tpu_custom_call.1} parent=1 // pred_region
      %s827 = ssub.s32 32, 32
      %828 = vsyncadd [#allocation3], %s827
      %s830 = sshll.u32 [#allocation2], 4
      %s831 = int_to_ptr.vmem [resolvable:$true] %s830
      %833 = dma.vmem_to_hbm [thread:$0]  %s831, 32, %s5, [#allocation3]
    $region25: #{tpu_custom_call.1} parent=1 // pred_fallthru
      _
    // Predicated region
    $region26: #{tpu_custom_call.1} parent=1 // pred_check
      _
    $region27: #{tpu_custom_call.1} parent=1 // pred_check_branch
      %835 = sbr.rel (0) target = $region29
    $region28: #{tpu_custom_call.1} parent=1 // pred_region
      %836 = dma.done [#allocation3], 32
    $region29: #{tpu_custom_call.1} parent=1 // pred_fallthru
      _
    %837 = vsyncpa [#allocation3], 1

</llo_original>
